<compile_context>
chip_gen: v5e
topology: v5e:2x2
jax: 0.10.0
libtpu: 0.0.40
codegen_flags: <defaults>
</compile_context>

<pallas_src>
import functools
import math

import jax
import jax.numpy as jnp
from jax.experimental import pallas as pl
from jax.experimental.pallas import tpu as pltpu


# Explicit scoped-VMEM budget: above the 16/32 MiB defaults, below v7x's
# 64 MiB physical per-TensorCore VMEM.
_VMEM_LIMIT = 48 * 1024 * 1024


# ------------------------------ tile selection -------------------------------

def _pick_tile(dim, cap, align):
    """Largest `align`-multiple block <= cap that divides `dim`; the full dim if
    it already fits under the cap.  Raises instead of silently returning an
    untiled full-array block (which can blow the VMEM budget, notably on v7x)."""
    if dim <= cap:
        return dim
    t = (cap // align) * align
    while t >= align:
        if dim % t == 0:
            return t
        t -= align
    # TODO(synk): support ragged dims via wrapper-side padding (pl.cdiv grid +
    # masked epilogue) instead of requiring divisibility.
    raise ValueError(
        f"no {align}-aligned tile <= {cap} divides dim={dim}; pad the input")


# ------------------------------- Pallas kernels -------------------------------

def _linear_kernel(x_ref, w_ref, b_ref, o_ref, acc_ref):
    """y = x @ w + b.  Grid (M/tm, N/tn, K/tk), k innermost; bf16 operands on
    the MXU, f32 VMEM accumulator, bf16 store."""
    k = pl.program_id(2)

    @pl.when(k == 0)
    def _():
        acc_ref[...] = jnp.zeros_like(acc_ref)

    acc_ref[...] += jnp.dot(x_ref[...], w_ref[...],
                            preferred_element_type=jnp.float32)

    @pl.when(k == pl.num_programs(2) - 1)
    def _():
        o_ref[...] = (acc_ref[...] + b_ref[...]).astype(o_ref.dtype)


def _matmul_add_ln_kernel(x_ref, w_ref, b_ref, r_ref, g_ref, bt_ref, o_ref,
                          acc_ref, *, eps):
    """y = LayerNorm(resid + x @ w + b): residual add + LN fused into the
    k-axis finalize epilogue (all LN math in f32)."""
    k = pl.program_id(1)

    @pl.when(k == 0)
    def _():
        acc_ref[...] = jnp.zeros_like(acc_ref)

    acc_ref[...] += jnp.dot(x_ref[...], w_ref[...],
                            preferred_element_type=jnp.float32)

    @pl.when(k == pl.num_programs(1) - 1)
    def _():
        y = acc_ref[...] + b_ref[...] + r_ref[...].astype(jnp.float32)
        mu = jnp.mean(y, axis=-1, keepdims=True)
        var = jnp.mean((y - mu) ** 2, axis=-1, keepdims=True)
        o_ref[...] = ((y - mu) * jax.lax.rsqrt(var + eps) * g_ref[...]
                      + bt_ref[...]).astype(o_ref.dtype)


def _ffn_add_ln_kernel(x_ref, w1_ref, b1_ref, w2_ref, b2_ref, g_ref, bt_ref,
                       o_ref, acc_ref, *, eps):
    """y = LayerNorm(x + relu(x@W1+b1)@W2 + b2).
    d_ff is tiled on grid axis 1: per step only (E, tf) / (tf, E) weight tiles
    and the (tm, tf) hidden activation live in VMEM; the (tm, E) f32 accumulator
    carries the partial second matmul.  Residual + LN run in the finalize."""
    j = pl.program_id(1)

    @pl.when(j == 0)
    def _():
        acc_ref[...] = jnp.zeros_like(acc_ref)

    h = jnp.dot(x_ref[...], w1_ref[...],
                preferred_element_type=jnp.float32) + b1_ref[...]
    h = jnp.maximum(h, 0.0).astype(jnp.bfloat16)
    acc_ref[...] += jnp.dot(h, w2_ref[...], preferred_element_type=jnp.float32)

    @pl.when(j == pl.num_programs(1) - 1)
    def _():
        y = acc_ref[...] + b2_ref[...] + x_ref[...].astype(jnp.float32)
        mu = jnp.mean(y, axis=-1, keepdims=True)
        var = jnp.mean((y - mu) ** 2, axis=-1, keepdims=True)
        o_ref[...] = ((y - mu) * jax.lax.rsqrt(var + eps) * g_ref[...]
                      + bt_ref[...]).astype(o_ref.dtype)


def _flash_mha_kernel(q_ref, k_ref, v_ref, o_ref, m_scr, l_scr, acc_scr,
                      *, n_head, head_dim, scale):
    """Flash-style attention, one (batch, q-tile) per outer grid point, KV
    streamed along the innermost grid axis with online-softmax scratch.

    q/k/v blocks are lane-dense (tile, E); the per-head split happens on the
    VMEM-resident block (head_dim < 128 lanes means the head split is a lane
    relayout wherever it is done — doing it here avoids any HBM relayout pass).
    q is scaled once (not the (tq, tkv) score matrix)."""
    ki = pl.program_id(2)

    @pl.when(ki == 0)
    def _():
        m_scr[...] = jnp.full(m_scr.shape, -jnp.inf, m_scr.dtype)
        l_scr[...] = jnp.zeros(l_scr.shape, l_scr.dtype)
        acc_scr[...] = jnp.zeros(acc_scr.shape, acc_scr.dtype)

    q = q_ref[0]                                   # (tq,  E) bf16
    k = k_ref[0]                                   # (tkv, E) bf16
    v = v_ref[0]                                   # (tkv, E) bf16

    for h in range(n_head):                        # static, unrolled
        lo = h * head_dim
        qh = (q[:, lo:lo + head_dim].astype(jnp.float32) * scale
              ).astype(jnp.bfloat16)
        kh = k[:, lo:lo + head_dim]
        vh = v[:, lo:lo + head_dim]
        # contract over head_dim without materializing k.T
        s = jax.lax.dot_general(qh, kh, (((1,), (1,)), ((), ())),
                                preferred_element_type=jnp.float32)  # (tq, tkv)
        m_prev = m_scr[h]                                            # (tq, 1)
        m_new = jnp.maximum(m_prev, jnp.max(s, axis=-1, keepdims=True))
        alpha = jnp.exp(m_prev - m_new)
        p = jnp.exp(s - m_new)
        l_scr[h] = alpha * l_scr[h] + jnp.sum(p, axis=-1, keepdims=True)
        acc_scr[h] = alpha * acc_scr[h] + jnp.dot(
            p.astype(jnp.bfloat16), vh, preferred_element_type=jnp.float32)
        m_scr[h] = m_new

    @pl.when(ki == pl.num_programs(2) - 1)
    def _():
        # exact normalization (not approx reciprocal) for closer parity with
        # nn.MultiheadAttention; single lane-dense (tq, E) store.
        out = jnp.concatenate(
            [acc_scr[h] / l_scr[h] for h in range(n_head)], axis=-1)
        o_ref[0] = out.astype(o_ref.dtype)
    # TODO(synk): optionally fuse the q/k/v projections into this kernel to
    # remove the q/k/v HBM round trip entirely.


# ------------------------------ kernel wrappers -------------------------------

def linear(x, w, b, *, tm_cap=256, tn_cap=512, tk_cap=512):
    """x:(M,K) bf16 @ w:(K,N) bf16 + b:(N,) f32 -> (M,N) bf16, f32 accumulate."""
    M, K = x.shape
    Nout = w.shape[1]
    tm = _pick_tile(M, tm_cap, 16)
    tn = _pick_tile(Nout, tn_cap, 128)
    tk = _pick_tile(K, tk_cap, 128)
    grid = (M // tm, Nout // tn, K // tk)
    return pl.pallas_call(
        _linear_kernel,
        out_shape=jax.ShapeDtypeStruct((M, Nout), jnp.bfloat16),
        grid_spec=pltpu.PrefetchScalarGridSpec(
            num_scalar_prefetch=0,
            grid=grid,
            in_specs=[
                pl.BlockSpec((tm, tk), lambda i, j, k: (i, k)),
                pl.BlockSpec((tk, tn), lambda i, j, k: (k, j)),
                pl.BlockSpec((1, tn), lambda i, j, k: (0, j)),
            ],
            out_specs=pl.BlockSpec((tm, tn), lambda i, j, k: (i, j)),
            scratch_shapes=[pltpu.VMEM((tm, tn), jnp.float32)],
        ),
        compiler_params=pltpu.CompilerParams(
            dimension_semantics=("parallel", "parallel", "arbitrary"),
            vmem_limit_bytes=_VMEM_LIMIT),
    )(x, w, b.reshape(1, Nout))


def matmul_add_layernorm(x, w, b, resid, g, beta, eps=1e-5,
                         *, tm_cap=256, tk_cap=512):
    """LayerNorm(resid + x @ w + b); LN fused into the matmul epilogue."""
    M, K = x.shape
    E = w.shape[1]
    tm = _pick_tile(M, tm_cap, 16)
    tk = _pick_tile(K, tk_cap, 128)
    grid = (M // tm, K // tk)
    return pl.pallas_call(
        functools.partial(_matmul_add_ln_kernel, eps=eps),
        out_shape=jax.ShapeDtypeStruct((M, E), jnp.bfloat16),
        grid_spec=pltpu.PrefetchScalarGridSpec(
            num_scalar_prefetch=0,
            grid=grid,
            in_specs=[
                pl.BlockSpec((tm, tk), lambda i, k: (i, k)),
                pl.BlockSpec((tk, E), lambda i, k: (k, 0)),
                pl.BlockSpec((1, E), lambda i, k: (0, 0)),
                pl.BlockSpec((tm, E), lambda i, k: (i, 0)),
                pl.BlockSpec((1, E), lambda i, k: (0, 0)),
                pl.BlockSpec((1, E), lambda i, k: (0, 0)),
            ],
            out_specs=pl.BlockSpec((tm, E), lambda i, k: (i, 0)),
            scratch_shapes=[pltpu.VMEM((tm, E), jnp.float32)],
        ),
        compiler_params=pltpu.CompilerParams(
            dimension_semantics=("parallel", "arbitrary"),
            vmem_limit_bytes=_VMEM_LIMIT),
    )(x, w, b.reshape(1, E), resid, g.reshape(1, E), beta.reshape(1, E))


def ffn_add_layernorm(x, w1, b1, w2, b2, g, beta, eps=1e-5,
                      *, tm_cap=256, tf_cap=512):
    """LayerNorm(x + relu(x@W1+b1)@W2+b2), d_ff tiled; final f32 output."""
    M, E = x.shape
    F = w1.shape[1]
    tm = _pick_tile(M, tm_cap, 16)
    tf = _pick_tile(F, tf_cap, 128)
    grid = (M // tm, F // tf)
    return pl.pallas_call(
        functools.partial(_ffn_add_ln_kernel, eps=eps),
        out_shape=jax.ShapeDtypeStruct((M, E), jnp.float32),
        grid_spec=pltpu.PrefetchScalarGridSpec(
            num_scalar_prefetch=0,
            grid=grid,
            in_specs=[
                pl.BlockSpec((tm, E), lambda i, j: (i, 0)),
                pl.BlockSpec((E, tf), lambda i, j: (0, j)),
                pl.BlockSpec((1, tf), lambda i, j: (0, j)),
                pl.BlockSpec((tf, E), lambda i, j: (j, 0)),
                pl.BlockSpec((1, E), lambda i, j: (0, 0)),
                pl.BlockSpec((1, E), lambda i, j: (0, 0)),
                pl.BlockSpec((1, E), lambda i, j: (0, 0)),
            ],
            out_specs=pl.BlockSpec((tm, E), lambda i, j: (i, 0)),
            scratch_shapes=[pltpu.VMEM((tm, E), jnp.float32)],
        ),
        compiler_params=pltpu.CompilerParams(
            dimension_semantics=("parallel", "arbitrary"),
            vmem_limit_bytes=_VMEM_LIMIT),
    )(x, w1, b1.reshape(1, F), w2, b2.reshape(1, E),
      g.reshape(1, E), beta.reshape(1, E))


def flash_mha(q, k, v, n_head, *, tq_cap=256, tkv_cap=512):
    """q,k,v: (N, S, E) bf16 -> (N, S, E) bf16 attention output."""
    N, S, E = q.shape
    head_dim = E // n_head
    scale = 1.0 / math.sqrt(head_dim)
    tq = _pick_tile(S, tq_cap, 16)
    tkv = _pick_tile(S, tkv_cap, 16)
    grid = (N, S // tq, S // tkv)
    return pl.pallas_call(
        functools.partial(_flash_mha_kernel, n_head=n_head,
                          head_dim=head_dim, scale=scale),
        out_shape=jax.ShapeDtypeStruct((N, S, E), jnp.bfloat16),
        grid_spec=pltpu.PrefetchScalarGridSpec(
            num_scalar_prefetch=0,
            grid=grid,
            in_specs=[
                pl.BlockSpec((1, tq, E), lambda n, qi, ki: (n, qi, 0)),
                pl.BlockSpec((1, tkv, E), lambda n, qi, ki: (n, ki, 0)),
                pl.BlockSpec((1, tkv, E), lambda n, qi, ki: (n, ki, 0)),
            ],
            out_specs=pl.BlockSpec((1, tq, E), lambda n, qi, ki: (n, qi, 0)),
            scratch_shapes=[
                pltpu.VMEM((n_head, tq, 1), jnp.float32),          # running max
                pltpu.VMEM((n_head, tq, 1), jnp.float32),          # running sum
                pltpu.VMEM((n_head, tq, head_dim), jnp.float32),   # acc
            ],
        ),
        compiler_params=pltpu.CompilerParams(
            dimension_semantics=("parallel", "parallel", "arbitrary"),
            vmem_limit_bytes=_VMEM_LIMIT),
    )(q, k, v)


# -------------------------------- model forward -------------------------------

def transformer_encoder_layer_forward(params, src, src_mask=None,
                                      src_key_padding_mask=None):
    """src: (S, N, E) float32.  Post-norm encoder layer, relu, eval mode."""
    if src_mask is not None or src_key_padding_mask is not None:
        # TODO(synk): attn_mask / key_padding_mask would need an additive-bias
        # input inside the flash kernel; only the None path is implemented.
        raise NotImplementedError("masks not supported")
    S, N, E = src.shape
    H = params["n_head"]

    # Batch-major bf16 activation stream; XLA fuses the relayout with the cast
    # into one half-width HBM pass.
    x = jnp.transpose(src, (1, 0, 2)).reshape(N * S, E).astype(jnp.bfloat16)

    # ---- self attention: q/k/v proj -> flash MHA -> out_proj + add + LN1 ----
    q = linear(x, params["wq"], params["bq"])                      # (N*S, E) bf16
    k = linear(x, params["wk"], params["bk"])
    v = linear(x, params["wv"], params["bv"])
    a = flash_mha(q.reshape(N, S, E), k.reshape(N, S, E),
                  v.reshape(N, S, E), H)                           # (N, S, E) bf16
    x = matmul_add_layernorm(a.reshape(N * S, E), params["wo"], params["bo"],
                             x, params["n1_g"], params["n1_b"])    # (N*S, E) bf16

    # ---- feed forward: linear1 + relu + linear2 + add + LN2 (one kernel) ----
    y = ffn_add_layernorm(x, params["w1"], params["b1"], params["w2"],
                          params["b2"], params["n2_g"], params["n2_b"])  # f32

    return jnp.transpose(y.reshape(N, S, E), (1, 0, 2))            # (S, N, E) f32


# -------------------------------- parameters ----------------------------------

def init_torch_params(key, d_model, n_head, d_ff):
    """Random parameters in the PyTorch nn.TransformerEncoderLayer layout."""
    k1, k2, k3, k4 = jax.random.split(key, 4)
    return {
        "n_head": n_head,
        # nn.MultiheadAttention
        "in_w": 0.02 * jax.random.normal(k1, (3 * d_model, d_model), jnp.float32),
        "in_b": jnp.zeros((3 * d_model,), jnp.float32),
        "out_w": 0.02 * jax.random.normal(k2, (d_model, d_model), jnp.float32),
        "out_b": jnp.zeros((d_model,), jnp.float32),
        # feed-forward
        "l1_w": 0.02 * jax.random.normal(k3, (d_ff, d_model), jnp.float32),
        "l1_b": jnp.zeros((d_ff,), jnp.float32),
        "l2_w": 0.02 * jax.random.normal(k4, (d_model, d_ff), jnp.float32),
        "l2_b": jnp.zeros((d_model,), jnp.float32),
        # layernorms
        "n1_g": jnp.ones((d_model,), jnp.float32),
        "n1_b": jnp.zeros((d_model,), jnp.float32),
        "n2_g": jnp.ones((d_model,), jnp.float32),
        "n2_b": jnp.zeros((d_model,), jnp.float32),
    }


def prepare_params(tp):
    """One-time prep: split the fused in_proj into q/k/v, pre-transpose every
    weight to (in, out) layout and cast matmul operands to bf16.  Biases and
    LayerNorm params stay f32.  No per-forward `.T` / cast passes remain."""
    E = tp["out_w"].shape[0]
    bf = jnp.bfloat16
    return {
        "n_head": tp["n_head"],
        "wq": tp["in_w"][0 * E:1 * E].T.astype(bf),
        "wk": tp["in_w"][1 * E:2 * E].T.astype(bf),
        "wv": tp["in_w"][2 * E:3 * E].T.astype(bf),
        "bq": tp["in_b"][0 * E:1 * E],
        "bk": tp["in_b"][1 * E:2 * E],
        "bv": tp["in_b"][2 * E:3 * E],
        "wo": tp["out_w"].T.astype(bf),
        "bo": tp["out_b"],
        "w1": tp["l1_w"].T.astype(bf),
        "b1": tp["l1_b"],
        "w2": tp["l2_w"].T.astype(bf),
        "b2": tp["l2_b"],
        "n1_g": tp["n1_g"], "n1_b": tp["n1_b"],
        "n2_g": tp["n2_g"], "n2_b": tp["n2_b"],
    }


# ----------------------------- pure-JAX reference ------------------------------

def reference_forward(tp, src, eps=1e-5):
    """f32 reference matching the PyTorch module in eval mode."""
    S, N, E = src.shape
    H = tp["n_head"]
    hd = E // H
    x = jnp.transpose(src, (1, 0, 2))                              # (N, S, E)
    qkv = x @ tp["in_w"].T + tp["in_b"]
    q, k, v = jnp.split(qkv, 3, axis=-1)

    def heads(t):
        return t.reshape(N, S, H, hd).transpose(0, 2, 1, 3)        # (N, H, S, hd)

    qh, kh, vh = heads(q), heads(k), heads(v)
    s = jnp.einsum("nhqd,nhkd->nhqk", qh, kh) / math.sqrt(hd)
    p = jax.nn.softmax(s, axis=-1)
    a = jnp.einsum("nhqk,nhkd->nhqd", p, vh).transpose(0, 2, 1, 3).reshape(N, S, E)
    a = a @ tp["out_w"].T + tp["out_b"]

    def ln(t, g, b):
        mu = t.mean(-1, keepdims=True)
        var = ((t - mu) ** 2).mean(-1, keepdims=True)
        return (t - mu) / jnp.sqrt(var + eps) * g + b

    x1 = ln(x + a, tp["n1_g"], tp["n1_b"])
    f = jax.nn.relu(x1 @ tp["l1_w"].T + tp["l1_b"]) @ tp["l2_w"].T + tp["l2_b"]
    x2 = ln(x1 + f, tp["n2_g"], tp["n2_b"])
    return jnp.transpose(x2, (1, 0, 2))


# ------------------------------------- main ------------------------------------

if __name__ == "__main__":
    d_model, n_head, d_ff = 32, 4, 64
    S, N = 8, 2  # (seq_len, batch)

    key = jax.random.PRNGKey(0)
    kp, kx = jax.random.split(key)
    torch_params = init_torch_params(kp, d_model, n_head, d_ff)
    params = prepare_params(torch_params)

    src = jax.random.normal(kx, (S, N, d_model), jnp.float32)

    out = transformer_encoder_layer_forward(params, src)
    out = jax.block_until_ready(out)

    assert out.shape == (S, N, d_model)
    assert bool(jnp.all(jnp.isfinite(out)))

    # Loose tolerance: the kernel path uses bf16 matmul operands / activations
    # (f32 accumulation), the reference is pure f32.
    ref = reference_forward(torch_params, src)
    err = float(jnp.max(jnp.abs(out - ref)))
    assert err < 0.15, f"max abs error {err} vs f32 reference"

    print("KERNEL_OK")
</pallas_src>

<mosaic_0001>
module attributes {stable_mosaic.version = 11 : i64} {
  func.func @_linear_kernel(%arg0: i32, %arg1: i32, %arg2: i32, %arg3: memref<16x32xbf16, #tpu.memory_space<vmem>>, %arg4: memref<32x32xbf16, #tpu.memory_space<vmem>>, %arg5: memref<1x32xf32, #tpu.memory_space<vmem>>, %arg6: memref<16x32xbf16, #tpu.memory_space<vmem>>, %arg7: memref<16x32xf32, #tpu.memory_space<vmem>>) attributes {dimension_semantics = [#tpu.dimension_semantics<parallel>, #tpu.dimension_semantics<parallel>, #tpu.dimension_semantics<arbitrary>], iteration_bounds = array<i64: 1, 1, 1>, scalar_prefetch = 0 : i64, scratch_operands = 1 : i64, tpu.core_type = #tpu.core_type<tc>, window_params = [{transform_indices = @transform_0, window_bounds = array<i64: 16, 32>}, {transform_indices = @transform_1, window_bounds = array<i64: 32, 32>}, {transform_indices = @transform_2, window_bounds = array<i64: 1, 32>}, {transform_indices = @transform_3, window_bounds = array<i64: 16, 32>}]} {
    %c0_i32 = arith.constant 0 : i32
    %0 = arith.cmpi eq, %arg2, %c0_i32 : i32
    %1 = arith.extui %0 : i1 to i32
    %c0_i32_0 = arith.constant 0 : i32
    %2 = arith.cmpi ne, %1, %c0_i32_0 : i32
    scf.if %2 {
      %cst_10 = arith.constant 0.000000e+00 : f32
      %12 = vector.broadcast %cst_10 : f32 to vector<16x32xf32>
      %c0_11 = arith.constant 0 : index
      %c0_12 = arith.constant 0 : index
      %13 = vector.load %arg7[%c0_11, %c0_12] : memref<16x32xf32, #tpu.memory_space<vmem>>, vector<16x32xf32>
      tpu.vector_store %arg7[%c0_11, %c0_12], %12 {strides = array<i32>} : memref<16x32xf32, #tpu.memory_space<vmem>>, vector<16x32xf32>,
    } else {
    }
    %c0 = arith.constant 0 : index
    %c0_1 = arith.constant 0 : index
    %3 = vector.load %arg7[%c0, %c0_1] : memref<16x32xf32, #tpu.memory_space<vmem>>, vector<16x32xf32>
    %c0_2 = arith.constant 0 : index
    %c0_3 = arith.constant 0 : index
    %4 = vector.load %arg3[%c0_2, %c0_3] : memref<16x32xbf16, #tpu.memory_space<vmem>>, vector<16x32xbf16>
    %c0_4 = arith.constant 0 : index
    %c0_5 = arith.constant 0 : index
    %5 = vector.load %arg4[%c0_4, %c0_5] : memref<32x32xbf16, #tpu.memory_space<vmem>>, vector<32x32xbf16>
    %cst = arith.constant dense<0.000000e+00> : vector<16x32xf32>
    %6 = tpu.matmul %4, %5, %cst {dimension_numbers = #tpu.dot_dimension_numbers<[1], [0], [0], [1], [0, 0, 1, 1], [], []>} : vector<16x32xbf16>, vector<32x32xbf16>, vector<16x32xf32> -> vector<16x32xf32>
    %7 = arith.addf %3, %6 : vector<16x32xf32>
    %c0_6 = arith.constant 0 : index
    %c0_7 = arith.constant 0 : index
    %8 = vector.load %arg7[%c0_6, %c0_7] : memref<16x32xf32, #tpu.memory_space<vmem>>, vector<16x32xf32>
    tpu.vector_store %arg7[%c0_6, %c0_7], %7 {strides = array<i32>} : memref<16x32xf32, #tpu.memory_space<vmem>>, vector<16x32xf32>,
    %c0_i32_8 = arith.constant 0 : i32
    %9 = arith.cmpi eq, %arg2, %c0_i32_8 : i32
    %10 = arith.extui %9 : i1 to i32
    %c0_i32_9 = arith.constant 0 : i32
    %11 = arith.cmpi ne, %10, %c0_i32_9 : i32
    scf.if %11 {
      %c0_10 = arith.constant 0 : index
      %c0_11 = arith.constant 0 : index
      %12 = vector.load %arg7[%c0_10, %c0_11] : memref<16x32xf32, #tpu.memory_space<vmem>>, vector<16x32xf32>
      %c0_12 = arith.constant 0 : index
      %c0_13 = arith.constant 0 : index
      %13 = vector.load %arg5[%c0_12, %c0_13] : memref<1x32xf32, #tpu.memory_space<vmem>>, vector<1x32xf32>
      %14 = vector.broadcast %13 : vector<1x32xf32> to vector<16x32xf32>
      %15 = arith.addf %12, %14 : vector<16x32xf32>
      %16 = arith.truncf %15 : vector<16x32xf32> to vector<16x32xbf16>
      %c0_14 = arith.constant 0 : index
      %c0_15 = arith.constant 0 : index
      %17 = vector.load %arg6[%c0_14, %c0_15] : memref<16x32xbf16, #tpu.memory_space<vmem>>, vector<16x32xbf16>
      tpu.vector_store %arg6[%c0_14, %c0_15], %16 {strides = array<i32>} : memref<16x32xbf16, #tpu.memory_space<vmem>>, vector<16x32xbf16>,
    } else {
    }
    return
  }
  func.func @transform_0(%arg0: i32, %arg1: i32, %arg2: i32) -> (i32, i32) {
    %c0_i32 = arith.constant 0 : i32
    return %arg0, %arg2 : i32, i32
  }
  func.func @transform_1(%arg0: i32, %arg1: i32, %arg2: i32) -> (i32, i32) {
    %c0_i32 = arith.constant 0 : i32
    return %arg2, %arg1 : i32, i32
  }
  func.func @transform_2(%arg0: i32, %arg1: i32, %arg2: i32) -> (i32, i32) {
    %c0_i32 = arith.constant 0 : i32
    %c0_i32_0 = arith.constant 0 : i32
    return %c0_i32, %arg1 : i32, i32
  }
  func.func @transform_3(%arg0: i32, %arg1: i32, %arg2: i32) -> (i32, i32) {
    %c0_i32 = arith.constant 0 : i32
    return %arg0, %arg1 : i32, i32
  }
}

</mosaic_0001>

<llo_original>
// kernel: tpu_custom_call.1
$region0: #{tpu_custom_call.1}
  #allocation0 [shape = 'u32[]', space=smem, size = 0x4, offset = 0x4, fixed_abs, tag = 'smem constant byte address 0x4 - core index']
  #allocation1 [shape = 'u32[72,128]{1,0:T(1,128)}', space=vmem, size = 0x9000, scoped, tag = 'internal scratch']
  #allocation2 [shape = 'f32[16,32]{1,0:T(8,128)}', space=vmem, size = 0x2000, scoped, tag = 'scratch operand']
  %s0 = inlined_call_operand.hbm [shape: bf16[16,32], index: 0, kind: input, shape index: {}]
  %s1 = inlined_call_operand.hbm [shape: bf16[32,32], index: 1, kind: input, shape index: {}]
  %s2 = inlined_call_operand.vmem [shape: f32[1,32], index: 2, kind: input, shape index: {}]
  %s3 = inlined_call_operand.hbm [shape: bf16[16,32], index: 3, kind: output, shape index: {}]
  %s4 = sld [smem:[#allocation0]]
  $region38: #{tpu_custom_call.1} parent=0
    _
  %s6 = ssub.s32 1, %s4
  %s7 = scalar_select 0, %s6, %s4
  $region1: #{tpu_custom_call.1} parent=0
    #allocation3 [shape = 'u8[4096]{0}', space=vmem, size = 0x1000, scoped, tag = 'input window, operand 0, single buffered']
    #allocation4 [shape = 's32[1]{0}', space=sflag, size = 0x4, scoped, tag = 'scoped memory for tpu_custom_call.1']
    #allocation5 [shape = 's32[1]{0}', space=sflag, size = 0x4, scoped, tag = 'scoped memory for tpu_custom_call.1']
    #allocation6 [shape = 'u8[8192]{0}', space=vmem, size = 0x2000, scoped, tag = 'input window, operand 1, single buffered']
    #allocation7 [shape = 's32[1]{0}', space=sflag, size = 0x4, scoped, tag = 'scoped memory for tpu_custom_call.1']
    #allocation8 [shape = 'u8[4096]{0}', space=vmem, size = 0x1000, scoped, tag = 'output window, operand 0, single buffered']
    %8 = vsyncpa [#allocation4], 0
    %9 = vsyncpa [#allocation7], 0
    %10 = vsyncpa [#allocation5], 0
    // Predicated region
    $region2: #{tpu_custom_call.1} parent=1 // pred_check
      _
    $region3: #{tpu_custom_call.1} parent=1 // pred_check_branch
      %12 = sbr.rel (0) target = $region5
    $region4: #{tpu_custom_call.1} parent=1 // pred_region
      %14 = vsyncadd [#allocation4], 0
      %s15 = sshll.u32 %s0, 4
      %s16 = int_to_ptr.hbm [resolvable:$true] %s15
      %s17 = sshll.u32 [#allocation3], 4
      %s18 = int_to_ptr.vmem [resolvable:$true] %s17
      %23 = dma.hbm_to_vmem [thread:$0]  %s16, 128, %s18, [#allocation4], 64, 64, 4
    $region5: #{tpu_custom_call.1} parent=1 // pred_fallthru
      _
    // Predicated region
    $region6: #{tpu_custom_call.1} parent=1 // pred_check
      _
    $region7: #{tpu_custom_call.1} parent=1 // pred_check_branch
      %25 = sbr.rel (0) target = $region9
    $region8: #{tpu_custom_call.1} parent=1 // pred_region
      %27 = vsyncadd [#allocation7], 0
      %s28 = sshll.u32 %s1, 4
      %s29 = int_to_ptr.hbm [resolvable:$true] %s28
      %s30 = sshll.u32 [#allocation6], 4
      %s31 = int_to_ptr.vmem [resolvable:$true] %s30
      %36 = dma.hbm_to_vmem [thread:$0]  %s29, 256, %s31, [#allocation7], 64, 64, 4
    $region9: #{tpu_custom_call.1} parent=1 // pred_fallthru
      _
    // Predicated region
    $region10: #{tpu_custom_call.1} parent=1 // pred_check
      _
    $region11: #{tpu_custom_call.1} parent=1 // pred_check_branch
      %38 = sbr.rel (0) target = $region13
    $region12: #{tpu_custom_call.1} parent=1 // pred_region
      _
    $region13: #{tpu_custom_call.1} parent=1 // pred_fallthru
      _
    // Predicated region
    $region14: #{tpu_custom_call.1} parent=1 // pred_check
      _
    $region15: #{tpu_custom_call.1} parent=1 // pred_check_branch
      %40 = sbr.rel (0) target = $region17
    $region16: #{tpu_custom_call.1} parent=1 // pred_region
      %42 = dma.done [#allocation4], 128
    $region17: #{tpu_custom_call.1} parent=1 // pred_fallthru
      _
    // Predicated region
    $region18: #{tpu_custom_call.1} parent=1 // pred_check
      _
    $region19: #{tpu_custom_call.1} parent=1 // pred_check_branch
      %44 = sbr.rel (0) target = $region21
    $region20: #{tpu_custom_call.1} parent=1 // pred_region
      %46 = dma.done [#allocation7], 256
    $region21: #{tpu_custom_call.1} parent=1 // pred_fallthru
      _
    %p48 = scmp.eq.s32.totalorder 0, 0
    // Predicated region
    $region22: #{tpu_custom_call.1} parent=1 // pred_check
      %p49 = pneg %p48
    $region23: #{tpu_custom_call.1} parent=1 // pred_check_branch
      %51 = sbr.rel (%p49) target = $region25
    $region24: #{tpu_custom_call.1} parent=1 // pred_region
      %vm52 = vcmask 261120
      %53 = vst.msk [vmem:[#allocation2] sm:$0xff] %vm52, 0.0
      %54 = vst.msk [vmem:[#allocation2 + $0x8] sm:$0xff] %vm52, 0.0
    $region25: #{tpu_custom_call.1} parent=1 // pred_fallthru
      _
    %v55 = vld [vmem:[#allocation2] sm:$0xff]
    %v56 = vld [vmem:[#allocation2 + $0x8] sm:$0xff]
    %v57 = vld [vmem:[#allocation3] sm:$0xf]
    %v58 = vld [vmem:[#allocation3 + $0x4] sm:$0xf]
    %v59 = vld [vmem:[#allocation6] sm:$0xf]
    %v60 = vld [vmem:[#allocation6 + $0x4] sm:$0xf]
    %v61 = vld [vmem:[#allocation6 + $0x8] sm:$0xf]
    %v62 = vld [vmem:[#allocation6 + $0xc] sm:$0xf]
    %v65 = vunpack.c.l.b16 %v57
    %v66 = vunpack.c.l.b16 %v58
    %v67 = vpack.c.b16 %v66, %v65
    %v72 = vunpack.c.l.b16 %v59
    %v73 = vunpack.c.l.b16 %v60
    %v74 = vunpack.c.l.b16 %v61
    %v75 = vunpack.c.l.b16 %v62
    %v76 = vpack.c.b16 %v73, %v72
    %v77 = vpack.c.b16 %v75, %v74
    %vm80 = vcmask 261120
    %v82 = vsel %vm80, %v67, 0
    %84 = vmatpush.bf16.msra.mxu0 0
    %85 = vmatpush.bf16.msra.mxu0 0
    %86 = vmatpush.bf16.msra.mxu0 0
    %87 = vmatpush.bf16.msra.mxu0 0
    %88 = vmatpush.bf16.msra.mxu0 0
    %89 = vmatpush.bf16.msra.mxu0 0
    %90 = vmatpush.bf16.msra.mxu0 %v77
    %91 = vmatpush.bf16.msra.mxu0 %v76
    %92 = vmatmul.bf16.gmra.mxu0 %v82
    %v93 = vpop.f32.mrf.mxu0
    %v94 = vadd.f32 0.0, %v93
    %v95 = vpop.f32.mrf.mxu0
    %v96 = vadd.f32 0.0, %v95
    %97 = vdwg.mxu0
    %v98 = vadd.f32 %v55, %v94
    %v99 = vadd.f32 %v56, %v96
    %100 = vst.msk [vmem:[#allocation2] sm:$0xff] %vm80, %v98
    %101 = vst.msk [vmem:[#allocation2 + $0x8] sm:$0xff] %vm80, %v99
    // Predicated region
    $region26: #{tpu_custom_call.1} parent=1 // pred_check
      %p102 = pneg %p48
    $region27: #{tpu_custom_call.1} parent=1 // pred_check_branch
      %104 = sbr.rel (%p102) target = $region29
    $region28: #{tpu_custom_call.1} parent=1 // pred_region
      %v105 = vld [vmem:[#allocation2] sm:$0xff]
      %v106 = vld [vmem:[#allocation2 + $0x8] sm:$0xff]
      %v107 = vld [vmem:[%s2] sm:$0x1]
      %v109 = vperm.slane %v107, 0
      %v111 = vadd.f32 %v105, %v109
      %v112 = vadd.f32 %v106, %v109
      %v113 = vpack.c.bf16 %v111, %v111
      %v114 = vpack.c.bf16 %v112, %v112
      %vm115 = vcmask 257024
      %116 = vst.msk [vmem:[#allocation8] sm:$0xf] %vm115, %v113
      %117 = vst.msk [vmem:[#allocation8 + $0x4] sm:$0xf] %vm115, %v114
    $region29: #{tpu_custom_call.1} parent=1 // pred_fallthru
      _
    // Predicated region
    $region30: #{tpu_custom_call.1} parent=1 // pred_check
      _
    $region31: #{tpu_custom_call.1} parent=1 // pred_check_branch
      %119 = sbr.rel (0) target = $region33
    $region32: #{tpu_custom_call.1} parent=1 // pred_region
      %121 = vsyncadd [#allocation5], 0
      %s122 = sshll.u32 [#allocation8], 4
      %s123 = int_to_ptr.vmem [resolvable:$true] %s122
      %s124 = sshll.u32 %s3, 4
      %s125 = int_to_ptr.hbm [resolvable:$true] %s124
      %130 = dma.vmem_to_hbm [thread:$0]  %s123, 128, %s125, [#allocation5], 64, 64, 4
    $region33: #{tpu_custom_call.1} parent=1 // pred_fallthru
      _
    // Predicated region
    $region34: #{tpu_custom_call.1} parent=1 // pred_check
      _
    $region35: #{tpu_custom_call.1} parent=1 // pred_check_branch
      %132 = sbr.rel (0) target = $region37
    $region36: #{tpu_custom_call.1} parent=1 // pred_region
      %134 = dma.done [#allocation5], 128
    $region37: #{tpu_custom_call.1} parent=1 // pred_fallthru
      _
    %135 = vsyncpa [#allocation4], 1
    %136 = vsyncpa [#allocation7], 1
    %137 = vsyncpa [#allocation5], 1

</llo_original>
